<compile_context>
chip_gen: v7x
topology: tpu7x:2x2x1
jax: 0.10.0
libtpu: 0.0.40
codegen_flags: <defaults>
</compile_context>

<pallas_src>
import functools

import jax
import jax.numpy as jnp
from jax.experimental import pallas as pl
from jax.experimental.pallas import tpu as pltpu


def _locked_dropout_kernel(bits_ref, x_ref, o_ref, *, threshold, scale):
    # bits_ref: (1, N) uint32 — the SAME tile on every grid step ("locked").
    # keep iff bits < threshold; fuse the 1/(1-p) scale; mask lands in x.dtype.
    bits = bits_ref[...]
    mask = jnp.where(
        bits < jnp.uint32(threshold),
        jnp.asarray(scale, dtype=o_ref.dtype),
        jnp.asarray(0, dtype=o_ref.dtype),
    )                                                     # (1, N)
    o_ref[...] = x_ref[...] * mask                        # broadcast over tile_t


def _choose_tile_t(T, N, itemsize, target_bytes=4 << 20):
    """Largest multiple-of-8 divisor of T whose (tile_t, N) tile fits the budget.

    ~4 MiB per tile => <= ~16 MiB in flight with double-buffered in + out,
    comfortably inside the default scoped VMEM on v5e/v6e/v7x, while big
    enough to amortize the ~0.35 us per-grid-step overhead.
    """
    best = None
    t = 8
    while t <= T:
        if T % t == 0 and t * N * itemsize <= target_bytes:
            best = t
        t += 8
    return best if best is not None else T  # full-extent block is always legal


def locked_dropout(x, dropout=0.0, *, training=True, key=None, tile_t=None):
    """LockedDropout forward. x: (T, B, H)."""
    if not training or dropout == 0.0:
        return x
    if key is None:
        key = jax.random.PRNGKey(0)

    T, B, H = x.shape
    N = B * H
    x2 = x.reshape(T, N)                       # lane-dense layout (free reshape)
    itemsize = jnp.dtype(x.dtype).itemsize

    keep_prob = 1.0 - float(dropout)
    # Integer-domain keep decision: keep iff bits < round(keep_prob * 2^32).
    threshold = min(int(round(keep_prob * (1 << 32))), (1 << 32) - 1)
    scale = 1.0 / keep_prob

    # One (1, B*H) draw of raw uint32 bits -> the single "locked" mask.
    bits = jax.random.bits(key, (1, N), dtype=jnp.uint32)

    if tile_t is None:
        tile_t = _choose_tile_t(T, N, itemsize)
    assert T % tile_t == 0, "tile_t must divide T"

    kernel = functools.partial(
        _locked_dropout_kernel, threshold=threshold, scale=scale
    )

    out2 = pl.pallas_call(
        kernel,
        out_shape=jax.ShapeDtypeStruct((T, N), x.dtype),
        grid=(T // tile_t,),
        in_specs=[
            pl.BlockSpec((1, N), lambda i: (0, 0)),          # same mask every step
            pl.BlockSpec((tile_t, N), lambda i: (i, 0)),     # x tile
        ],
        out_specs=pl.BlockSpec((tile_t, N), lambda i: (i, 0)),
        compiler_params=pltpu.CompilerParams(
            # No cross-step carry: let v7x shard the T axis across both TCs.
            dimension_semantics=("parallel",),
        ),
        cost_estimate=pl.CostEstimate(
            flops=T * N,
            transcendentals=0,
            bytes_accessed=2 * T * N * itemsize + N * 4,
        ),
    )(bits, x2)
    return out2.reshape(T, B, H)


if __name__ == "__main__":
    root = jax.random.PRNGKey(0)
    xkey, mkey = jax.random.split(root)

    T, B, H = 8, 4, 32
    x = jax.random.normal(xkey, (T, B, H), dtype=jnp.float32)

    dropout = 0.25
    y = locked_dropout(x, dropout=dropout, training=True, key=mkey)
    y = jax.block_until_ready(y)

    # --- sanity checks of the locked-dropout semantics ---
    scale = 1.0 / (1.0 - dropout)
    ratio = y / jnp.where(x == 0, 1.0, x)            # per-element scale factor
    is_zero = jnp.isclose(ratio, 0.0, atol=1e-5)
    is_scale = jnp.isclose(ratio, scale, atol=1e-4)
    assert bool(jnp.all(is_zero | is_scale)), "mask values must be {0, 1/(1-p)}"
    # Mask identical across the T (sequence) axis -> "locked".
    assert bool(jnp.all(jnp.isclose(ratio, ratio[0:1], atol=1e-4))), \
        "mask must be shared across the sequence axis"
    # Roughly the right keep fraction (loose bound for a small sample).
    keep_frac = float(jnp.mean(is_scale[0].astype(jnp.float32)))
    assert 0.5 < keep_frac < 0.95, f"unexpected keep fraction {keep_frac}"
    # Eval / dropout==0 path is identity.
    y_eval = locked_dropout(x, dropout=dropout, training=False)
    assert bool(jnp.all(y_eval == x))
    y_nodrop = locked_dropout(x, dropout=0.0, training=True)
    assert bool(jnp.all(y_nodrop == x))

    print("KERNEL_OK")
</pallas_src>

<mosaic_0001>
module attributes {stable_mosaic.version = 11 : i64} {
  func.func @_locked_dropout_kernel(%arg0: i32, %arg1: memref<1x128xi32, #tpu.memory_space<vmem>>, %arg2: memref<8x128xf32, #tpu.memory_space<vmem>>, %arg3: memref<8x128xf32, #tpu.memory_space<vmem>>) attributes {dimension_semantics = [#tpu.dimension_semantics<parallel>], iteration_bounds = array<i64: 1>, scalar_prefetch = 0 : i64, scratch_operands = 0 : i64, tpu.core_type = #tpu.core_type<tc>, window_params = [{pipeline_mode = #tpu.pipeline_mode<synchronous>, transform_indices = @transform_0, window_bounds = array<i64: 1, 128>}, {transform_indices = @transform_1, window_bounds = array<i64: 8, 128>}, {transform_indices = @transform_2, window_bounds = array<i64: 8, 128>}]} {
    %c0 = arith.constant 0 : index
    %c0_0 = arith.constant 0 : index
    %0 = vector.load %arg1[%c0, %c0_0] : memref<1x128xi32, #tpu.memory_space<vmem>>, vector<1x128xi32>
    %c-1073741824_i32 = arith.constant -1073741824 : i32
    %1 = vector.broadcast %c-1073741824_i32 : i32 to vector<1x128xi32>
    %2 = arith.cmpi ult, %0, %1 : vector<1x128xi32>
    %cst = arith.constant 1.33333337 : f32
    %cst_1 = arith.constant 0.000000e+00 : f32
    %3 = vector.broadcast %cst : f32 to vector<1x128xf32>
    %4 = vector.broadcast %cst_1 : f32 to vector<1x128xf32>
    %5 = arith.select %2, %3, %4 : vector<1x128xi1>, vector<1x128xf32>
    %c0_2 = arith.constant 0 : index
    %c0_3 = arith.constant 0 : index
    %6 = vector.load %arg2[%c0_2, %c0_3] : memref<8x128xf32, #tpu.memory_space<vmem>>, vector<8x128xf32>
    %7 = vector.broadcast %5 : vector<1x128xf32> to vector<8x128xf32>
    %8 = arith.mulf %6, %7 : vector<8x128xf32>
    %c0_4 = arith.constant 0 : index
    %c0_5 = arith.constant 0 : index
    %9 = vector.load %arg3[%c0_4, %c0_5] : memref<8x128xf32, #tpu.memory_space<vmem>>, vector<8x128xf32>
    tpu.vector_store %arg3[%c0_4, %c0_5], %8 {strides = array<i32>} : memref<8x128xf32, #tpu.memory_space<vmem>>, vector<8x128xf32>,
    return
  }
  func.func @transform_0(%arg0: i32) -> (i32, i32) {
    %c0_i32 = arith.constant 0 : i32
    %c0_i32_0 = arith.constant 0 : i32
    %c0_i32_1 = arith.constant 0 : i32
    return %c0_i32, %c0_i32_0 : i32, i32
  }
  func.func @transform_1(%arg0: i32) -> (i32, i32) {
    %c0_i32 = arith.constant 0 : i32
    %c0_i32_0 = arith.constant 0 : i32
    return %arg0, %c0_i32 : i32, i32
  }
  func.func @transform_2(%arg0: i32) -> (i32, i32) {
    %c0_i32 = arith.constant 0 : i32
    %c0_i32_0 = arith.constant 0 : i32
    return %arg0, %c0_i32 : i32, i32
  }
}

</mosaic_0001>

<llo_original>
// kernel: tpu_custom_call.1
$region0: #{tpu_custom_call.1}
  #allocation0 [shape = 'u32[]', space=smem, size = 0x4, offset = 0x4, fixed_abs, tag = 'smem constant byte address 0x4 - core index']
  #allocation1 [shape = 'u32[144,128]{1,0:T(1,128)}', space=vmem, size = 0x12000, scoped, tag = 'internal scratch']
  %s0 = inlined_call_operand.hbm [shape: u32[1,128], index: 0, kind: input, shape index: {}]
  %s1 = inlined_call_operand.hbm [shape: f32[8,128], index: 1, kind: input, shape index: {}]
  %s2 = inlined_call_operand.hbm [shape: f32[8,128], index: 2, kind: output, shape index: {}]
  %s3 = sld [smem:[#allocation0]]
  $region26: #{tpu_custom_call.1} parent=0
    _
  %s5 = ssub.s32 1, %s3
  %s6 = scalar_select 0, %s5, %s3
  $region1: #{tpu_custom_call.1} parent=0
    #allocation2 [shape = 'u8[512]{0}', space=vmem, size = 0x400, scoped, tag = 'input window, operand 0, single buffered']
    #allocation3 [shape = 's32[1]{0}', space=sflag, size = 0x4, scoped, tag = 'scoped memory for tpu_custom_call.1']
    #allocation4 [shape = 's32[1]{0}', space=sflag, size = 0x4, scoped, tag = 'scoped memory for tpu_custom_call.1']
    #allocation5 [shape = 'u8[4096]{0}', space=vmem, size = 0x1000, scoped, tag = 'input window, operand 1, single buffered']
    #allocation6 [shape = 's32[1]{0}', space=sflag, size = 0x4, scoped, tag = 'scoped memory for tpu_custom_call.1']
    #allocation7 [shape = 'u8[4096]{0}', space=vmem, size = 0x1000, scoped, tag = 'output window, operand 0, single buffered']
    %7 = vsyncpa [#allocation3], 0
    %8 = vsyncpa [#allocation6], 0
    %9 = vsyncpa [#allocation4], 0
    // Predicated region
    $region2: #{tpu_custom_call.1} parent=1 // pred_check
      _
    $region3: #{tpu_custom_call.1} parent=1 // pred_check_branch
      %11 = sbr.rel (0) target = $region5
    $region4: #{tpu_custom_call.1} parent=1 // pred_region
      %s13 = ssub.s32 16, 16
      %14 = vsyncadd [#allocation3], %s13
      %s16 = sshll.u32 [#allocation2], 4
      %s17 = int_to_ptr.vmem [resolvable:$true] %s16
      %19 = dma.hbm_to_vmem [thread:$0]  %s0, 16, %s17, [#allocation3]
    $region5: #{tpu_custom_call.1} parent=1 // pred_fallthru
      _
    // Predicated region
    $region6: #{tpu_custom_call.1} parent=1 // pred_check
      _
    $region7: #{tpu_custom_call.1} parent=1 // pred_check_branch
      %21 = sbr.rel (0) target = $region9
    $region8: #{tpu_custom_call.1} parent=1 // pred_region
      %s23 = ssub.s32 128, 128
      %24 = vsyncadd [#allocation6], %s23
      %s26 = sshll.u32 [#allocation5], 4
      %s27 = int_to_ptr.vmem [resolvable:$true] %s26
      %29 = dma.hbm_to_vmem [thread:$0]  %s1, 128, %s27, [#allocation6]
    $region9: #{tpu_custom_call.1} parent=1 // pred_fallthru
      _
    // Predicated region
    $region10: #{tpu_custom_call.1} parent=1 // pred_check
      _
    $region11: #{tpu_custom_call.1} parent=1 // pred_check_branch
      %31 = sbr.rel (0) target = $region13
    $region12: #{tpu_custom_call.1} parent=1 // pred_region
      %32 = dma.done [#allocation3], 16
    $region13: #{tpu_custom_call.1} parent=1 // pred_fallthru
      _
    // Predicated region
    $region14: #{tpu_custom_call.1} parent=1 // pred_check
      _
    $region15: #{tpu_custom_call.1} parent=1 // pred_check_branch
      %34 = sbr.rel (0) target = $region17
    $region16: #{tpu_custom_call.1} parent=1 // pred_region
      %35 = dma.done [#allocation6], 128
    $region17: #{tpu_custom_call.1} parent=1 // pred_fallthru
      _
    %v36 = vld [vmem:[#allocation2] sm:$0x1]
    %vm37 = vcmp.lt.u32.totalorder %v36, 3221225472
    %v38 = vsel %vm37, 1.3333334, 0.0
    %v39 = vld [vmem:[#allocation5] sm:$0xff]
    %v41 = vlaneseq
    %v42 = vshrl.u32 %v41, 7
    %v43 = vsub.s32 0, %v42
    %v44 = vrot.slane %v38, %v43
    %v46 = vmul.f32 %v39, %v44
    %47 = vst [vmem:[#allocation7] sm:$0xff] %v46
    // Predicated region
    $region18: #{tpu_custom_call.1} parent=1 // pred_check
      _
    $region19: #{tpu_custom_call.1} parent=1 // pred_check_branch
      %49 = sbr.rel (0) target = $region21
    $region20: #{tpu_custom_call.1} parent=1 // pred_region
      %s51 = ssub.s32 128, 128
      %52 = vsyncadd [#allocation4], %s51
      %s54 = sshll.u32 [#allocation7], 4
      %s55 = int_to_ptr.vmem [resolvable:$true] %s54
      %57 = dma.vmem_to_hbm [thread:$0]  %s55, 128, %s2, [#allocation4]
    $region21: #{tpu_custom_call.1} parent=1 // pred_fallthru
      _
    // Predicated region
    $region22: #{tpu_custom_call.1} parent=1 // pred_check
      _
    $region23: #{tpu_custom_call.1} parent=1 // pred_check_branch
      %59 = sbr.rel (0) target = $region25
    $region24: #{tpu_custom_call.1} parent=1 // pred_region
      %60 = dma.done [#allocation4], 128
    $region25: #{tpu_custom_call.1} parent=1 // pred_fallthru
      _
    %61 = vsyncpa [#allocation3], 1
    %62 = vsyncpa [#allocation6], 1
    %63 = vsyncpa [#allocation4], 1

</llo_original>
